<compile_context>
chip_gen: v6e
topology: v6e:2x2x1
jax: 0.10.0
libtpu: 0.0.40
codegen_flags: <defaults>
</compile_context>

<pallas_src>
import functools

import jax
import jax.numpy as jnp
from jax.experimental import pallas as pl
from jax.experimental.pallas import tpu as pltpu

K = 3                 # kernel_size
PAD = (K - 1) // 2    # = 1
N_LAYERS = 4          # conv1..conv4
NEG_SLOPE = 0.01      # F.leaky_relu negative_slope
BN_EPS = 1e-5         # nn.BatchNorm2d default eps
R0 = 8                # sublane-aligned row offset of the image interior in the scratch


def _fused_kernel(x_ref, a_ref, p_ref, g_ref, beta_ref, o_ref, xp_ref, *, img_w):
    """Four fused [Conv2d(3x3, pad=1) -> BatchNorm2d(batch stats) -> LeakyReLU].

    Lane-dense layout: the minor (lane) dim of every activation is W*C.

    x_ref:    (B, H, W*C)         input activation
    a_ref:    (4*K, W*C, W*C)     banded conv matrices, one per (layer, ky)
    p_ref:    (W*C, W*C)          channel-pooling pattern  P[i,j] = (i%C == j%C)
    g_ref:    (4, 1, W*C)         BN gamma, lane-replicated
    beta_ref: (4, 1, W*C)         BN beta,  lane-replicated
    o_ref:    (B, H, W*C)         output activation
    xp_ref:   (B, HP, W*C)        VMEM scratch: resident activation + zero pad rows
    """
    B, H, WC = x_ref.shape
    HP = xp_ref.shape[1]
    inv_n = 1.0 / float(B * H * img_w)

    # Zero only the padding rows (aligned 8-row blocks around the interior);
    # the interior is rewritten with each layer's activation.
    xp_ref[:, 0:R0, :] = jnp.zeros((B, R0, WC), jnp.float32)
    xp_ref[:, R0 + H:HP, :] = jnp.zeros((B, HP - R0 - H, WC), jnp.float32)
    xp_ref[:, R0:R0 + H, :] = x_ref[...]

    @pl.loop(0, N_LAYERS)
    def _(layer):
        # --- Conv2d(3x3, padding=1): 3 banded (W*C, W*C) matmuls per image.
        #     x-padding is implicit in the band structure of a_ref; y-padding
        #     comes from the zero rows surrounding the interior in xp_ref.
        accs = []
        colsum = jnp.zeros((1, WC), jnp.float32)
        colsq = jnp.zeros((1, WC), jnp.float32)
        for b in range(B):
            acc = jnp.zeros((H, WC), jnp.float32)
            for ky in range(K):
                lhs = xp_ref[b, R0 - PAD + ky:R0 - PAD + ky + H, :]   # (H, W*C)
                acc = acc + jnp.dot(lhs, a_ref[layer * K + ky],
                                    preferred_element_type=jnp.float32)
            accs.append(acc)
            colsum = colsum + jnp.sum(acc, axis=0, keepdims=True)
            colsq = colsq + jnp.sum(acc * acc, axis=0, keepdims=True)

        # --- BatchNorm2d (training-mode batch stats over (N, H, W)).
        #     Per-channel sums kept lane-replicated via the pooling matmul.
        #     Conv bias is omitted: a per-channel constant added before
        #     training-mode BN is exactly cancelled by the mean subtraction.
        s = jnp.dot(colsum, p_ref[...], preferred_element_type=jnp.float32)
        ss = jnp.dot(colsq, p_ref[...], preferred_element_type=jnp.float32)
        mean = s * inv_n
        var = jnp.maximum(ss * inv_n - mean * mean, 0.0)   # biased variance, clamped
        scale = jax.lax.rsqrt(var + BN_EPS) * g_ref[layer]
        shift = beta_ref[layer] - mean * scale

        # --- scale/shift + LeakyReLU(0.01); write back to the resident scratch
        #     (aligned rows) so the next layer reads it in place.
        for b in range(B):
            y = accs[b] * scale + shift
            y = jnp.where(y >= 0, y, NEG_SLOPE * y)
            xp_ref[b, R0:R0 + H, :] = y

    o_ref[...] = xp_ref[:, R0:R0 + H, :]


def _banded_conv_matrices(w, img_w):
    """PyTorch conv weight (C_out, C_in, K, K) -> (K, W*C_in, W*C_out) banded mats.

    A[ky][xi*C + c_in, xo*C + c_out] = w[c_out, c_in, ky, xi - xo + PAD]
    when 0 <= xi - xo + PAD < K, else 0.  Out-of-band entries implement the
    zero padding along x for free.
    """
    c_out, c_in = w.shape[0], w.shape[1]
    xi = jnp.arange(img_w)[:, None]
    xo = jnp.arange(img_w)[None, :]
    kx = xi - xo + PAD                                   # (W, W)
    valid = ((kx >= 0) & (kx < K)).astype(w.dtype)
    kx = jnp.clip(kx, 0, K - 1)
    wt = jnp.transpose(w, (2, 3, 1, 0))                  # (ky, kx, C_in, C_out)
    a = wt[:, kx] * valid[None, :, :, None, None]        # (ky, xi, xo, C_in, C_out)
    a = jnp.transpose(a, (0, 1, 3, 2, 4))                # (ky, xi, C_in, xo, C_out)
    return a.reshape(K, img_w * c_in, img_w * c_out)


def feature_generator_forward(x_nchw, params):
    """params: list of 4 dicts with 'w' (C,C,K,K), 'b', 'gamma', 'beta' (C,)."""
    B, C, H, W = x_nchw.shape
    WC = W * C
    HP = R0 + H + 8   # aligned interior rows [R0, R0+H); pad rows live around it

    # Lane-dense activation layout: NCHW -> NHWC -> (B, H, W*C).
    x = jnp.transpose(x_nchw, (0, 2, 3, 1)).reshape(B, H, WC).astype(jnp.float32)

    # Per-(layer, ky) banded conv matrices; conv bias intentionally dropped
    # (exactly cancelled by training-mode BatchNorm's mean subtraction).
    a_all = jnp.concatenate(
        [_banded_conv_matrices(p["w"].astype(jnp.float32), W) for p in params],
        axis=0)                                          # (4*K, WC, WC)
    g_all = jnp.stack(
        [jnp.tile(p["gamma"].astype(jnp.float32), W).reshape(1, WC) for p in params])
    beta_all = jnp.stack(
        [jnp.tile(p["beta"].astype(jnp.float32), W).reshape(1, WC) for p in params])

    # Channel-pooling pattern for BN stats (lane i and j share a channel iff i%C == j%C).
    lane = jnp.arange(WC)
    p_mat = (lane[:, None] % C == lane[None, :] % C).astype(jnp.float32)

    flops = N_LAYERS * (2 * B * K * H * WC * WC + 2 * 2 * WC * WC + 8 * B * H * WC)
    bytes_accessed = (2 * B * H * WC + a_all.size + p_mat.size
                      + 2 * N_LAYERS * WC) * 4

    kernel = functools.partial(_fused_kernel, img_w=W)

    # TODO(synk): production shapes need a halo-tiled spatial/batch grid with a
    # two-phase BN reduction and 'parallel' dimension_semantics; the toy shape
    # fits in VMEM in a single invocation so no grid is used here.
    out = pl.pallas_call(
        kernel,
        out_shape=jax.ShapeDtypeStruct((B, H, WC), jnp.float32),
        in_specs=[pl.BlockSpec(memory_space=pltpu.MemorySpace.VMEM)] * 5,
        out_specs=pl.BlockSpec(memory_space=pltpu.MemorySpace.VMEM),
        scratch_shapes=[pltpu.VMEM((B, HP, WC), jnp.float32)],
        compiler_params=pltpu.CompilerParams(vmem_limit_bytes=32 * 1024 * 1024),
        cost_estimate=pl.CostEstimate(flops=flops, transcendentals=N_LAYERS * WC,
                                      bytes_accessed=bytes_accessed),
    )(x, a_all, p_mat, g_all, beta_all)

    out = out.reshape(B, H, W, C)
    return jnp.transpose(out, (0, 3, 1, 2))              # NHWC -> NCHW


def _reference_forward(x_nchw, params):
    """Pure-JAX reference (lax conv, with bias) for correctness checking."""
    out = x_nchw.astype(jnp.float32)
    for p in params:
        out = jax.lax.conv_general_dilated(
            out, p["w"].astype(jnp.float32), window_strides=(1, 1), padding="SAME",
            dimension_numbers=("NCHW", "OIHW", "NCHW"))
        out = out + p["b"].reshape(1, -1, 1, 1)
        mean = jnp.mean(out, axis=(0, 2, 3), keepdims=True)
        var = jnp.mean((out - mean) ** 2, axis=(0, 2, 3), keepdims=True)
        out = (out - mean) * jax.lax.rsqrt(var + BN_EPS)
        out = out * p["gamma"].reshape(1, -1, 1, 1) + p["beta"].reshape(1, -1, 1, 1)
        out = jnp.where(out >= 0, out, NEG_SLOPE * out)
    return out


def init_params(key, dim):
    """Deterministic synthetic init matching nn.Conv2d / nn.BatchNorm2d shapes."""
    params = []
    fan_in = dim * K * K
    scale = 1.0 / jnp.sqrt(jnp.float32(fan_in))
    for i in range(N_LAYERS):
        kw, kb, key = jax.random.split(jax.random.fold_in(key, i), 3)
        w = jax.random.uniform(kw, (dim, dim, K, K), jnp.float32, -scale, scale)
        b = jax.random.uniform(kb, (dim,), jnp.float32, -scale, scale)
        gamma = jnp.ones((dim,), jnp.float32)    # BatchNorm2d default weight
        beta = jnp.zeros((dim,), jnp.float32)    # BatchNorm2d default bias
        params.append({"w": w, "b": b, "gamma": gamma, "beta": beta})
    return params


if __name__ == "__main__":
    B, C, H, W = 2, 4, 16, 16          # small shapes: dim=4, spatial 16x16
    key = jax.random.PRNGKey(0)
    k_x, k_p = jax.random.split(key)
    x = jax.random.normal(k_x, (B, C, H, W), jnp.float32)   # PyTorch NCHW input
    params = init_params(k_p, C)

    fwd = jax.jit(feature_generator_forward)
    out = jax.block_until_ready(fwd(x, params))

    ref = jax.block_until_ready(_reference_forward(x, params))
    assert out.shape == (B, C, H, W)
    max_err = jnp.max(jnp.abs(out - ref))
    assert jnp.allclose(out, ref, atol=2e-4, rtol=2e-4), f"max abs err = {max_err}"

    print("KERNEL_OK")
</pallas_src>

<mosaic_0001>
module attributes {stable_mosaic.version = 11 : i64} {
  func.func @_fused_kernel(%arg0: memref<2x16x64xf32, #tpu.memory_space<vmem>>, %arg1: memref<12x64x64xf32, #tpu.memory_space<vmem>>, %arg2: memref<64x64xf32, #tpu.memory_space<vmem>>, %arg3: memref<4x1x64xf32, #tpu.memory_space<vmem>>, %arg4: memref<4x1x64xf32, #tpu.memory_space<vmem>>, %arg5: memref<2x16x64xf32, #tpu.memory_space<vmem>>, %arg6: memref<2x32x64xf32, #tpu.memory_space<vmem>>) attributes {dimension_semantics = [], scalar_prefetch = 0 : i64, scratch_operands = 1 : i64, tpu.core_type = #tpu.core_type<tc>} {
    %cst = arith.constant 0.000000e+00 : f32
    %0 = vector.broadcast %cst : f32 to vector<2x8x64xf32>
    %c0 = arith.constant 0 : index
    %c0_0 = arith.constant 0 : index
    %c0_1 = arith.constant 0 : index
    %1 = vector.load %arg6[%c0, %c0_0, %c0_1] : memref<2x32x64xf32, #tpu.memory_space<vmem>>, vector<2x8x64xf32>
    tpu.vector_store %arg6[%c0, %c0_0, %c0_1], %0 {strides = array<i32>} : memref<2x32x64xf32, #tpu.memory_space<vmem>>, vector<2x8x64xf32>,
    %cst_2 = arith.constant 0.000000e+00 : f32
    %2 = vector.broadcast %cst_2 : f32 to vector<2x8x64xf32>
    %c0_3 = arith.constant 0 : index
    %c24 = arith.constant 24 : index
    %c0_4 = arith.constant 0 : index
    %3 = vector.load %arg6[%c0_3, %c24, %c0_4] : memref<2x32x64xf32, #tpu.memory_space<vmem>>, vector<2x8x64xf32>
    tpu.vector_store %arg6[%c0_3, %c24, %c0_4], %2 {strides = array<i32>} : memref<2x32x64xf32, #tpu.memory_space<vmem>>, vector<2x8x64xf32>,
    %c0_5 = arith.constant 0 : index
    %c0_6 = arith.constant 0 : index
    %c0_7 = arith.constant 0 : index
    %4 = vector.load %arg0[%c0_5, %c0_6, %c0_7] : memref<2x16x64xf32, #tpu.memory_space<vmem>>, vector<2x16x64xf32>
    %c0_8 = arith.constant 0 : index
    %c8 = arith.constant 8 : index
    %c0_9 = arith.constant 0 : index
    %5 = vector.load %arg6[%c0_8, %c8, %c0_9] : memref<2x32x64xf32, #tpu.memory_space<vmem>>, vector<2x16x64xf32>
    tpu.vector_store %arg6[%c0_8, %c8, %c0_9], %4 {strides = array<i32>} : memref<2x32x64xf32, #tpu.memory_space<vmem>>, vector<2x16x64xf32>,
    %c0_i32 = arith.constant 0 : i32
    %c4_i32 = arith.constant 4 : i32
    %6 = arith.addi %c0_i32, %c4_i32 : i32
    %c1_i32 = arith.constant 1 : i32
    scf.for %arg7 = %c0_i32 to %6 step %c1_i32  : i32 {
      %c1_i32_17 = arith.constant 1 : i32
      %9 = arith.muli %arg7, %c1_i32_17 : i32
      %c0_i32_18 = arith.constant 0 : i32
      %10 = arith.addi %c0_i32_18, %9 : i32
      %cst_19 = arith.constant 0.000000e+00 : f32
      %11 = vector.broadcast %cst_19 : f32 to vector<1x64xf32>
      %cst_20 = arith.constant 0.000000e+00 : f32
      %12 = vector.broadcast %cst_20 : f32 to vector<1x64xf32>
      %cst_21 = arith.constant 0.000000e+00 : f32
      %13 = vector.broadcast %cst_21 : f32 to vector<16x64xf32>
      %c0_22 = arith.constant 0 : index
      %c7 = arith.constant 7 : index
      %c0_23 = arith.constant 0 : index
      %14 = vector.load %arg6[%c0_22, %c7, %c0_23] : memref<2x32x64xf32, #tpu.memory_space<vmem>>, vector<1x16x64xf32>
      %15 = vector.shape_cast %14 : vector<1x16x64xf32> to vector<16x64xf32>
      %c3_i32 = arith.constant 3 : i32
      %16 = arith.muli %10, %c3_i32 : i32
      %c0_i32_24 = arith.constant 0 : i32
      %17 = arith.addi %16, %c0_i32_24 : i32
      %18 = arith.index_cast %17 : i32 to index
      %c0_25 = arith.constant 0 : index
      %c0_26 = arith.constant 0 : index
      %19 = vector.load %arg1[%18, %c0_25, %c0_26] : memref<12x64x64xf32, #tpu.memory_space<vmem>>, vector<1x64x64xf32>
      %20 = vector.shape_cast %19 : vector<1x64x64xf32> to vector<64x64xf32>
      %cst_27 = arith.constant dense<0.000000e+00> : vector<16x64xf32>
      %21 = tpu.matmul %15, %20, %cst_27 {dimension_numbers = #tpu.dot_dimension_numbers<[1], [0], [0], [1], [0, 0, 1, 1], [], []>} : vector<16x64xf32>, vector<64x64xf32>, vector<16x64xf32> -> vector<16x64xf32>
      %22 = arith.addf %13, %21 : vector<16x64xf32>
      %c0_28 = arith.constant 0 : index
      %c8_29 = arith.constant 8 : index
      %c0_30 = arith.constant 0 : index
      %23 = vector.load %arg6[%c0_28, %c8_29, %c0_30] : memref<2x32x64xf32, #tpu.memory_space<vmem>>, vector<1x16x64xf32>
      %24 = vector.shape_cast %23 : vector<1x16x64xf32> to vector<16x64xf32>
      %c3_i32_31 = arith.constant 3 : i32
      %25 = arith.muli %10, %c3_i32_31 : i32
      %c1_i32_32 = arith.constant 1 : i32
      %26 = arith.addi %25, %c1_i32_32 : i32
      %27 = arith.index_cast %26 : i32 to index
      %c0_33 = arith.constant 0 : index
      %c0_34 = arith.constant 0 : index
      %28 = vector.load %arg1[%27, %c0_33, %c0_34] : memref<12x64x64xf32, #tpu.memory_space<vmem>>, vector<1x64x64xf32>
      %29 = vector.shape_cast %28 : vector<1x64x64xf32> to vector<64x64xf32>
      %cst_35 = arith.constant dense<0.000000e+00> : vector<16x64xf32>
      %30 = tpu.matmul %24, %29, %cst_35 {dimension_numbers = #tpu.dot_dimension_numbers<[1], [0], [0], [1], [0, 0, 1, 1], [], []>} : vector<16x64xf32>, vector<64x64xf32>, vector<16x64xf32> -> vector<16x64xf32>
      %31 = arith.addf %22, %30 : vector<16x64xf32>
      %c0_36 = arith.constant 0 : index
      %c9 = arith.constant 9 : index
      %c0_37 = arith.constant 0 : index
      %32 = vector.load %arg6[%c0_36, %c9, %c0_37] : memref<2x32x64xf32, #tpu.memory_space<vmem>>, vector<1x16x64xf32>
      %33 = vector.shape_cast %32 : vector<1x16x64xf32> to vector<16x64xf32>
      %c3_i32_38 = arith.constant 3 : i32
      %34 = arith.muli %10, %c3_i32_38 : i32
      %c2_i32 = arith.constant 2 : i32
      %35 = arith.addi %34, %c2_i32 : i32
      %36 = arith.index_cast %35 : i32 to index
      %c0_39 = arith.constant 0 : index
      %c0_40 = arith.constant 0 : index
      %37 = vector.load %arg1[%36, %c0_39, %c0_40] : memref<12x64x64xf32, #tpu.memory_space<vmem>>, vector<1x64x64xf32>
      %38 = vector.shape_cast %37 : vector<1x64x64xf32> to vector<64x64xf32>
      %cst_41 = arith.constant dense<0.000000e+00> : vector<16x64xf32>
      %39 = tpu.matmul %33, %38, %cst_41 {dimension_numbers = #tpu.dot_dimension_numbers<[1], [0], [0], [1], [0, 0, 1, 1], [], []>} : vector<16x64xf32>, vector<64x64xf32>, vector<16x64xf32> -> vector<16x64xf32>
      %40 = arith.addf %31, %39 : vector<16x64xf32>
      %cst_42 = arith.constant dense<0.000000e+00> : vector<64xf32>
      %41 = vector.multi_reduction <add>, %40, %cst_42 [0] : vector<16x64xf32> to vector<64xf32>
      %42 = vector.shape_cast %41 : vector<64xf32> to vector<1x64xf32>
      %43 = arith.addf %11, %42 : vector<1x64xf32>
      %44 = arith.mulf %40, %40 : vector<16x64xf32>
      %cst_43 = arith.constant dense<0.000000e+00> : vector<64xf32>
      %45 = vector.multi_reduction <add>, %44, %cst_43 [0] : vector<16x64xf32> to vector<64xf32>
      %46 = vector.shape_cast %45 : vector<64xf32> to vector<1x64xf32>
      %47 = arith.addf %12, %46 : vector<1x64xf32>
      %cst_44 = arith.constant 0.000000e+00 : f32
      %48 = vector.broadcast %cst_44 : f32 to vector<16x64xf32>
      %c1 = arith.constant 1 : index
      %c7_45 = arith.constant 7 : index
      %c0_46 = arith.constant 0 : index
      %49 = vector.load %arg6[%c1, %c7_45, %c0_46] : memref<2x32x64xf32, #tpu.memory_space<vmem>>, vector<1x16x64xf32>
      %50 = vector.shape_cast %49 : vector<1x16x64xf32> to vector<16x64xf32>
      %c3_i32_47 = arith.constant 3 : i32
      %51 = arith.muli %10, %c3_i32_47 : i32
      %c0_i32_48 = arith.constant 0 : i32
      %52 = arith.addi %51, %c0_i32_48 : i32
      %53 = arith.index_cast %52 : i32 to index
      %c0_49 = arith.constant 0 : index
      %c0_50 = arith.constant 0 : index
      %54 = vector.load %arg1[%53, %c0_49, %c0_50] : memref<12x64x64xf32, #tpu.memory_space<vmem>>, vector<1x64x64xf32>
      %55 = vector.shape_cast %54 : vector<1x64x64xf32> to vector<64x64xf32>
      %cst_51 = arith.constant dense<0.000000e+00> : vector<16x64xf32>
      %56 = tpu.matmul %50, %55, %cst_51 {dimension_numbers = #tpu.dot_dimension_numbers<[1], [0], [0], [1], [0, 0, 1, 1], [], []>} : vector<16x64xf32>, vector<64x64xf32>, vector<16x64xf32> -> vector<16x64xf32>
      %57 = arith.addf %48, %56 : vector<16x64xf32>
      %c1_52 = arith.constant 1 : index
      %c8_53 = arith.constant 8 : index
      %c0_54 = arith.constant 0 : index
      %58 = vector.load %arg6[%c1_52, %c8_53, %c0_54] : memref<2x32x64xf32, #tpu.memory_space<vmem>>, vector<1x16x64xf32>
      %59 = vector.shape_cast %58 : vector<1x16x64xf32> to vector<16x64xf32>
      %c3_i32_55 = arith.constant 3 : i32
      %60 = arith.muli %10, %c3_i32_55 : i32
      %c1_i32_56 = arith.constant 1 : i32
      %61 = arith.addi %60, %c1_i32_56 : i32
      %62 = arith.index_cast %61 : i32 to index
      %c0_57 = arith.constant 0 : index
      %c0_58 = arith.constant 0 : index
      %63 = vector.load %arg1[%62, %c0_57, %c0_58] : memref<12x64x64xf32, #tpu.memory_space<vmem>>, vector<1x64x64xf32>
      %64 = vector.shape_cast %63 : vector<1x64x64xf32> to vector<64x64xf32>
      %cst_59 = arith.constant dense<0.000000e+00> : vector<16x64xf32>
      %65 = tpu.matmul %59, %64, %cst_59 {dimension_numbers = #tpu.dot_dimension_numbers<[1], [0], [0], [1], [0, 0, 1, 1], [], []>} : vector<16x64xf32>, vector<64x64xf32>, vector<16x64xf32> -> vector<16x64xf32>
      %66 = arith.addf %57, %65 : vector<16x64xf32>
      %c1_60 = arith.constant 1 : index
      %c9_61 = arith.constant 9 : index
      %c0_62 = arith.constant 0 : index
      %67 = vector.load %arg6[%c1_60, %c9_61, %c0_62] : memref<2x32x64xf32, #tpu.memory_space<vmem>>, vector<1x16x64xf32>
      %68 = vector.shape_cast %67 : vector<1x16x64xf32> to vector<16x64xf32>
      %c3_i32_63 = arith.constant 3 : i32
      %69 = arith.muli %10, %c3_i32_63 : i32
      %c2_i32_64 = arith.constant 2 : i32
      %70 = arith.addi %69, %c2_i32_64 : i32
      %71 = arith.index_cast %70 : i32 to index
      %c0_65 = arith.constant 0 : index
      %c0_66 = arith.constant 0 : index
      %72 = vector.load %arg1[%71, %c0_65, %c0_66] : memref<12x64x64xf32, #tpu.memory_space<vmem>>, vector<1x64x64xf32>
      %73 = vector.shape_cast %72 : vector<1x64x64xf32> to vector<64x64xf32>
      %cst_67 = arith.constant dense<0.000000e+00> : vector<16x64xf32>
      %74 = tpu.matmul %68, %73, %cst_67 {dimension_numbers = #tpu.dot_dimension_numbers<[1], [0], [0], [1], [0, 0, 1, 1], [], []>} : vector<16x64xf32>, vector<64x64xf32>, vector<16x64xf32> -> vector<16x64xf32>
      %75 = arith.addf %66, %74 : vector<16x64xf32>
      %cst_68 = arith.constant dense<0.000000e+00> : vector<64xf32>
      %76 = vector.multi_reduction <add>, %75, %cst_68 [0] : vector<16x64xf32> to vector<64xf32>
      %77 = vector.shape_cast %76 : vector<64xf32> to vector<1x64xf32>
      %78 = arith.addf %43, %77 : vector<1x64xf32>
      %79 = arith.mulf %75, %75 : vector<16x64xf32>
      %cst_69 = arith.constant dense<0.000000e+00> : vector<64xf32>
      %80 = vector.multi_reduction <add>, %79, %cst_69 [0] : vector<16x64xf32> to vector<64xf32>
      %81 = vector.shape_cast %80 : vector<64xf32> to vector<1x64xf32>
      %82 = arith.addf %47, %81 : vector<1x64xf32>
      %c0_70 = arith.constant 0 : index
      %c0_71 = arith.constant 0 : index
      %83 = vector.load %arg2[%c0_70, %c0_71] : memref<64x64xf32, #tpu.memory_space<vmem>>, vector<64x64xf32>
      %cst_72 = arith.constant dense<0.000000e+00> : vector<1x64xf32>
      %84 = tpu.matmul %78, %83, %cst_72 {dimension_numbers = #tpu.dot_dimension_numbers<[1], [0], [0], [1], [0, 0, 1, 1], [], []>} : vector<1x64xf32>, vector<64x64xf32>, vector<1x64xf32> -> vector<1x64xf32>
      %c0_73 = arith.constant 0 : index
      %c0_74 = arith.constant 0 : index
      %85 = vector.load %arg2[%c0_73, %c0_74] : memref<64x64xf32, #tpu.memory_space<vmem>>, vector<64x64xf32>
      %cst_75 = arith.constant dense<0.000000e+00> : vector<1x64xf32>
      %86 = tpu.matmul %82, %85, %cst_75 {dimension_numbers = #tpu.dot_dimension_numbers<[1], [0], [0], [1], [0, 0, 1, 1], [], []>} : vector<1x64xf32>, vector<64x64xf32>, vector<1x64xf32> -> vector<1x64xf32>
      %cst_76 = arith.constant 0.001953125 : f32
      %87 = vector.broadcast %cst_76 : f32 to vector<1x64xf32>
      %88 = arith.mulf %84, %87 : vector<1x64xf32>
      %cst_77 = arith.constant 0.001953125 : f32
      %89 = vector.broadcast %cst_77 : f32 to vector<1x64xf32>
      %90 = arith.mulf %86, %89 : vector<1x64xf32>
      %91 = arith.mulf %88, %88 : vector<1x64xf32>
      %92 = arith.subf %90, %91 : vector<1x64xf32>
      %cst_78 = arith.constant 0.000000e+00 : f32
      %93 = vector.broadcast %cst_78 : f32 to vector<1x64xf32>
      %94 = arith.maximumf %92, %93 : vector<1x64xf32>
      %cst_79 = arith.constant 9.99999974E-6 : f32
      %95 = vector.broadcast %cst_79 : f32 to vector<1x64xf32>
      %96 = arith.addf %94, %95 : vector<1x64xf32>
      %97 = math.rsqrt %96 : vector<1x64xf32>
      %98 = arith.index_cast %10 : i32 to index
      %c0_80 = arith.constant 0 : index
      %c0_81 = arith.constant 0 : index
      %99 = vector.load %arg3[%98, %c0_80, %c0_81] : memref<4x1x64xf32, #tpu.memory_space<vmem>>, vector<1x1x64xf32>
      %100 = vector.shape_cast %99 : vector<1x1x64xf32> to vector<1x64xf32>
      %101 = arith.mulf %97, %100 : vector<1x64xf32>
      %102 = arith.index_cast %10 : i32 to index
      %c0_82 = arith.constant 0 : index
      %c0_83 = arith.constant 0 : index
      %103 = vector.load %arg4[%102, %c0_82, %c0_83] : memref<4x1x64xf32, #tpu.memory_space<vmem>>, vector<1x1x64xf32>
      %104 = vector.shape_cast %103 : vector<1x1x64xf32> to vector<1x64xf32>
      %105 = arith.mulf %88, %101 : vector<1x64xf32>
      %106 = arith.subf %104, %105 : vector<1x64xf32>
      %107 = vector.broadcast %101 : vector<1x64xf32> to vector<16x64xf32>
      %108 = arith.mulf %40, %107 : vector<16x64xf32>
      %109 = vector.broadcast %106 : vector<1x64xf32> to vector<16x64xf32>
      %110 = arith.addf %108, %109 : vector<16x64xf32>
      %cst_84 = arith.constant 0.000000e+00 : f32
      %111 = vector.broadcast %cst_84 : f32 to vector<16x64xf32>
      %112 = arith.cmpf oge, %110, %111 : vector<16x64xf32>
      %cst_85 = arith.constant 0.00999999977 : f32
      %113 = vector.broadcast %cst_85 : f32 to vector<16x64xf32>
      %114 = arith.mulf %113, %110 : vector<16x64xf32>
      %115 = arith.select %112, %110, %114 : vector<16x64xi1>, vector<16x64xf32>
      %c0_86 = arith.constant 0 : index
      %c8_87 = arith.constant 8 : index
      %c0_88 = arith.constant 0 : index
      %116 = vector.load %arg6[%c0_86, %c8_87, %c0_88] : memref<2x32x64xf32, #tpu.memory_space<vmem>>, vector<1x16x64xf32>
      %117 = vector.shape_cast %116 : vector<1x16x64xf32> to vector<16x64xf32>
      %118 = vector.shape_cast %115 : vector<16x64xf32> to vector<1x16x64xf32>
      tpu.vector_store %arg6[%c0_86, %c8_87, %c0_88], %118 {strides = array<i32>} : memref<2x32x64xf32, #tpu.memory_space<vmem>>, vector<1x16x64xf32>,
      %119 = vector.broadcast %101 : vector<1x64xf32> to vector<16x64xf32>
      %120 = arith.mulf %75, %119 : vector<16x64xf32>
      %121 = vector.broadcast %106 : vector<1x64xf32> to vector<16x64xf32>
      %122 = arith.addf %120, %121 : vector<16x64xf32>
      %cst_89 = arith.constant 0.000000e+00 : f32
      %123 = vector.broadcast %cst_89 : f32 to vector<16x64xf32>
      %124 = arith.cmpf oge, %122, %123 : vector<16x64xf32>
      %cst_90 = arith.constant 0.00999999977 : f32
      %125 = vector.broadcast %cst_90 : f32 to vector<16x64xf32>
      %126 = arith.mulf %125, %122 : vector<16x64xf32>
      %127 = arith.select %124, %122, %126 : vector<16x64xi1>, vector<16x64xf32>
      %c1_91 = arith.constant 1 : index
      %c8_92 = arith.constant 8 : index
      %c0_93 = arith.constant 0 : index
      %128 = vector.load %arg6[%c1_91, %c8_92, %c0_93] : memref<2x32x64xf32, #tpu.memory_space<vmem>>, vector<1x16x64xf32>
      %129 = vector.shape_cast %128 : vector<1x16x64xf32> to vector<16x64xf32>
      %130 = vector.shape_cast %127 : vector<16x64xf32> to vector<1x16x64xf32>
      tpu.vector_store %arg6[%c1_91, %c8_92, %c0_93], %130 {strides = array<i32>} : memref<2x32x64xf32, #tpu.memory_space<vmem>>, vector<1x16x64xf32>,
    }
    %c4_i32_10 = arith.constant 4 : i32
    %c0_11 = arith.constant 0 : index
    %c8_12 = arith.constant 8 : index
    %c0_13 = arith.constant 0 : index
    %7 = vector.load %arg6[%c0_11, %c8_12, %c0_13] : memref<2x32x64xf32, #tpu.memory_space<vmem>>, vector<2x16x64xf32>
    %c0_14 = arith.constant 0 : index
    %c0_15 = arith.constant 0 : index
    %c0_16 = arith.constant 0 : index
    %8 = vector.load %arg5[%c0_14, %c0_15, %c0_16] : memref<2x16x64xf32, #tpu.memory_space<vmem>>, vector<2x16x64xf32>
    tpu.vector_store %arg5[%c0_14, %c0_15, %c0_16], %7 {strides = array<i32>} : memref<2x16x64xf32, #tpu.memory_space<vmem>>, vector<2x16x64xf32>,
    return
  }
}

</mosaic_0001>

<llo_original>
// kernel: tile.43
$region0: #{tile.43}
  #allocation0 [shape = 's32[1]{0}', space=sflag, size = 0x4, scoped, tag = 'scoped memory for tile.43']
  %s0 = inlined_call_operand.vmem [shape: f32[4], index: 0, kind: input, shape index: {}]
  %s1 = inlined_call_operand.vmem [shape: f32[16,4], index: 1, kind: output, shape index: {}]
  // Predicated region
  $region2: #{tile.43} parent=0 // pred_check
    _
  $region3: #{tile.43} parent=0 // pred_check_branch
    %3 = sbr.rel (0) target = $region5
  $region4: #{tile.43} parent=0 // pred_region
    _
  $region5: #{tile.43} parent=0 // pred_fallthru
    _
  %v4 = vld [vmem:[%s0] ss:$0 sm:$0xff]
  %5 = vst [vmem:[%s1] sm:$0xff] %v4
  %s6 = scalar_lea.vmem %s1, 8
  %7 = vst [vmem:[%s6] sm:$0xff] %v4

// kernel: tile.56
$region0: #{tile.56}
  %s0 = inlined_call_operand.vmem [shape: f32[16,4], index: 0, kind: input, shape index: {}]
  %s1 = inlined_call_operand.vmem [shape: f32[1,1,64], index: 1, kind: output, shape index: {}]
  $region1: #{tile.56} parent=0
    #allocation0 [shape = 'u8[4096]{0}', space=vmem, size = 0x1000, scoped, tag = 'scoped mem for output reshape']
    %v2 = vld [vmem:[%s0] sm:$0x1]
    %vm3 = vcmask 31744
    %4 = vst.msk [vmem:[#allocation0] sm:$0x1] %vm3, %v2
    %s5 = scalar_lea.vmem %s0, 15
    %v6 = vld [vmem:[%s5] sm:$0x1]
    %7 = vrot.lane.b32.xlu0 %v6, 60
    %v8 = vpop.permute.xlu0 %7
    %vm9 = vcmask 523744
    %10 = vst.msk [vmem:[#allocation0] sm:$0x1] %vm9, %v8
    %s11 = scalar_lea.vmem %s0, 14
    %v12 = vld [vmem:[%s11] sm:$0x1]
    %13 = vrot.lane.b32.xlu0 %v12, 56
    %v14 = vpop.permute.xlu0 %13
    %vm15 = vcmask 490944
    %16 = vst.msk [vmem:[#allocation0] sm:$0x1] %vm15, %v14
    %s17 = scalar_lea.vmem %s0, 13
    %v18 = vld [vmem:[%s17] sm:$0x1]
    %19 = vrot.lane.b32.xlu0 %v18, 52
    %v20 = vpop.permute.xlu0 %19
    %vm21 = vcmask 458144
    %22 = vst.msk [vmem:[#allocation0] sm:$0x1] %vm21, %v20
    %s23 = scalar_lea.vmem %s0, 12
    %v24 = vld [vmem:[%s23] sm:$0x1]
    %25 = vrot.lane.b32.xlu0 %v24, 48
    %v26 = vpop.permute.xlu0 %25
    %vm27 = vcmask 425344
    %28 = vst.msk [vmem:[#allocation0] sm:$0x1] %vm27, %v26
    %s29 = scalar_lea.vmem %s0, 11
    %v30 = vld [vmem:[%s29] sm:$0x1]
    %31 = vrot.lane.b32.xlu0 %v30, 44
    %v32 = vpop.permute.xlu0 %31
    %vm33 = vcmask 392544
    %34 = vst.msk [vmem:[#allocation0] sm:$0x1] %vm33, %v32
    %s35 = scalar_lea.vmem %s0, 10
    %v36 = vld [vmem:[%s35] sm:$0x1]
    %37 = vrot.lane.b32.xlu0 %v36, 40
    %v38 = vpop.permute.xlu0 %37
    %vm39 = vcmask 359744
    %40 = vst.msk [vmem:[#allocation0] sm:$0x1] %vm39, %v38
    %s41 = scalar_lea.vmem %s0, 9
    %v42 = vld [vmem:[%s41] sm:$0x1]
    %43 = vrot.lane.b32.xlu0 %v42, 36
    %v44 = vpop.permute.xlu0 %43
    %vm45 = vcmask 326944
    %46 = vst.msk [vmem:[#allocation0] sm:$0x1] %vm45, %v44
    %s47 = scalar_lea.vmem %s0, 8
    %v48 = vld [vmem:[%s47] sm:$0x1]
    %49 = vrot.lane.b32.xlu0 %v48, 32
    %v50 = vpop.permute.xlu0 %49
    %vm51 = vcmask 294144
    %52 = vst.msk [vmem:[#allocation0] sm:$0x1] %vm51, %v50
    %s53 = scalar_lea.vmem %s0, 7
    %v54 = vld [vmem:[%s53] sm:$0x1]
    %55 = vrot.lane.b32.xlu0 %v54, 28
    %v56 = vpop.permute.xlu0 %55
    %vm57 = vcmask 261344
    %58 = vst.msk [vmem:[#allocation0] sm:$0x1] %vm57, %v56
    %s59 = scalar_lea.vmem %s0, 6
    %v60 = vld [vmem:[%s59] sm:$0x1]
    %61 = vrot.lane.b32.xlu0 %v60, 24
    %v62 = vpop.permute.xlu0 %61
    %vm63 = vcmask 228544
    %64 = vst.msk [vmem:[#allocation0] sm:$0x1] %vm63, %v62
    %s65 = scalar_lea.vmem %s0, 5
    %v66 = vld [vmem:[%s65] sm:$0x1]
    %67 = vrot.lane.b32.xlu0 %v66, 20
    %v68 = vpop.permute.xlu0 %67
    %vm69 = vcmask 195744
    %70 = vst.msk [vmem:[#allocation0] sm:$0x1] %vm69, %v68
    %s71 = scalar_lea.vmem %s0, 4
    %v72 = vld [vmem:[%s71] sm:$0x1]
    %73 = vrot.lane.b32.xlu0 %v72, 16
    %v74 = vpop.permute.xlu0 %73
    %vm75 = vcmask 162944
    %76 = vst.msk [vmem:[#allocation0] sm:$0x1] %vm75, %v74
    %s77 = scalar_lea.vmem %s0, 3
    %v78 = vld [vmem:[%s77] sm:$0x1]
    %79 = vrot.lane.b32.xlu0 %v78, 12
    %v80 = vpop.permute.xlu0 %79
    %vm81 = vcmask 130144
    %82 = vst.msk [vmem:[#allocation0] sm:$0x1] %vm81, %v80
    %s83 = scalar_lea.vmem %s0, 2
    %v84 = vld [vmem:[%s83] sm:$0x1]
    %85 = vrot.lane.b32.xlu0 %v84, 8
    %v86 = vpop.permute.xlu0 %85
    %vm87 = vcmask 97344
    %88 = vst.msk [vmem:[#allocation0] sm:$0x1] %vm87, %v86
    %s89 = scalar_lea.vmem %s0, 1
    %v90 = vld [vmem:[%s89] sm:$0x1]
    %91 = vrot.lane.b32.xlu0 %v90, 4
    %v92 = vpop.permute.xlu0 %91
    %vm93 = vcmask 64544
    %94 = vst.msk [vmem:[#allocation0] sm:$0x1] %vm93, %v92
    %s96 = sshll.u32 1, 1
    %s97 = ssub.s32 %s96, 1
    %v99 = vld [vmem:[#allocation0] sm:%s97]
    %s100 = sshll.u32 1, 1
    %s101 = ssub.s32 %s100, 1
    %102 = vst [vmem:[%s1] sm:%s101] %v99

// kernel: feature_generator_forward.1
$region0: #{feature_generator_forward.1}
  #allocation0 [shape = 'u32[]', space=smem, size = 0x4, offset = 0x4, fixed_abs, tag = 'smem constant byte address 0x4 - core index']
  #allocation1 [shape = 'u32[144,128]{1,0:T(1,128)}', space=vmem, size = 0x12000, scoped, tag = 'internal scratch']
  #allocation2 [shape = 'f32[2,32,64]{2,1,0:T(8,128)}', space=vmem, size = 0x8000, scoped, tag = 'scratch operand']
  %s0 = inlined_call_operand.vmem [shape: f32[2,16,64], index: 0, kind: input, shape index: {}]
  %s1 = inlined_call_operand.vmem [shape: f32[12,64,64], index: 1, kind: input, shape index: {}]
  %s2 = inlined_call_operand.vmem [shape: f32[64,64], index: 2, kind: input, shape index: {}]
  %s3 = inlined_call_operand.vmem [shape: f32[4,1,64], index: 3, kind: input, shape index: {}]
  %s4 = inlined_call_operand.vmem [shape: f32[4,1,64], index: 4, kind: input, shape index: {}]
  %s5 = inlined_call_operand.vmem [shape: f32[2,16,64], index: 5, kind: output, shape index: {}]
  %s6 = sld [smem:[#allocation0]]
  $region37: #{feature_generator_forward.1} parent=0
    _
  %s8 = ssub.s32 1, %s6
  %s9 = scalar_select 0, %s8, %s6
  // Predicated region
  $region2: #{feature_generator_forward.1} parent=0 // pred_check
    _
  $region3: #{feature_generator_forward.1} parent=0 // pred_check_branch
    %11 = sbr.rel (0) target = $region5
  $region4: #{feature_generator_forward.1} parent=0 // pred_region
    _
  $region5: #{feature_generator_forward.1} parent=0 // pred_fallthru
    _
  // Predicated region
  $region6: #{feature_generator_forward.1} parent=0 // pred_check
    _
  $region7: #{feature_generator_forward.1} parent=0 // pred_check_branch
    %13 = sbr.rel (0) target = $region9
  $region8: #{feature_generator_forward.1} parent=0 // pred_region
    _
  $region9: #{feature_generator_forward.1} parent=0 // pred_fallthru
    _
  // Predicated region
  $region10: #{feature_generator_forward.1} parent=0 // pred_check
    _
  $region11: #{feature_generator_forward.1} parent=0 // pred_check_branch
    %15 = sbr.rel (0) target = $region13
  $region12: #{feature_generator_forward.1} parent=0 // pred_region
    _
  $region13: #{feature_generator_forward.1} parent=0 // pred_fallthru
    _
  // Predicated region
  $region14: #{feature_generator_forward.1} parent=0 // pred_check
    _
  $region15: #{feature_generator_forward.1} parent=0 // pred_check_branch
    %17 = sbr.rel (0) target = $region17
  $region16: #{feature_generator_forward.1} parent=0 // pred_region
    _
  $region17: #{feature_generator_forward.1} parent=0 // pred_fallthru
    _
  // Predicated region
  $region18: #{feature_generator_forward.1} parent=0 // pred_check
    _
  $region19: #{feature_generator_forward.1} parent=0 // pred_check_branch
    %19 = sbr.rel (0) target = $region21
  $region20: #{feature_generator_forward.1} parent=0 // pred_region
    _
  $region21: #{feature_generator_forward.1} parent=0 // pred_fallthru
    _
  %vm20 = vcmask 523264
  %21 = vst.msk [vmem:[#allocation2] sm:$0xff] %vm20, 0.0
  %22 = vst.msk [vmem:[#allocation2 + $0x20] sm:$0xff] %vm20, 0.0
  %23 = vst.msk [vmem:[#allocation2 + $0x18] sm:$0xff] %vm20, 0.0
  %24 = vst.msk [vmem:[#allocation2 + $0x38] sm:$0xff] %vm20, 0.0
  %v25 = vld [vmem:[%s0] sm:$0xff]
  %v26 = vld [vmem:[%s0 + $0x8] sm:$0xff]
  %v27 = vld [vmem:[%s0 + $0x10] sm:$0xff]
  %v28 = vld [vmem:[%s0 + $0x18] sm:$0xff]
  %29 = vst.msk [vmem:[#allocation2 + $0x8] sm:$0xff] %vm20, %v25
  %30 = vst.msk [vmem:[#allocation2 + $0x10] sm:$0xff] %vm20, %v26
  %31 = vst.msk [vmem:[#allocation2 + $0x28] sm:$0xff] %vm20, %v27
  %32 = vst.msk [vmem:[#allocation2 + $0x30] sm:$0xff] %vm20, %v28
  loop: start=0, step=1, limit=4
  $region22: #{feature_generator_forward.1} parent=0 // loop_pre_header
    _
  $region23: #{feature_generator_forward.1} parent=0 // loop_header
    %s34 = sphi 0, %s38
    %p35 = scmp.ge.s32.totalorder %s34, 4
  $region24: #{feature_generator_forward.1} parent=0 // loop_header_branch
    %37 = sbr.rel (%p35) target = $region28
  $region25: #{feature_generator_forward.1} parent=0 // loop_body
    %v39 = vld [vmem:[#allocation2 + $0x7] sm:$0xff]
    %v40 = vld [vmem:[#allocation2 + $0xf] sm:$0xff]
    %s41 = smul.u32 %s34, 3
    %s42 = smul.u32 %s41, 64
    %s43 = scalar_lea.vmem %s1, %s42
    %v44 = vld [vmem:[%s43] sm:$0xff]
    %v45 = vld [vmem:[%s43 + $0x8] sm:$0xff]
    %v46 = vld [vmem:[%s43 + $0x10] sm:$0xff]
    %v47 = vld [vmem:[%s43 + $0x18] sm:$0xff]
    %v48 = vld [vmem:[%s43 + $0x20] sm:$0xff]
    %v49 = vld [vmem:[%s43 + $0x28] sm:$0xff]
    %v50 = vld [vmem:[%s43 + $0x30] sm:$0xff]
    %v51 = vld [vmem:[%s43 + $0x38] sm:$0xff]
    %v52 = vld [vmem:[#allocation2 + $0x8] sm:$0xff]
    %v53 = vld [vmem:[#allocation2 + $0x10] sm:$0xff]
    %s54 = sadd.s32 %s41, 1
    %s55 = smul.u32 %s54, 64
    %s56 = scalar_lea.vmem %s1, %s55
    %v57 = vld [vmem:[%s56] sm:$0xff]
    %v58 = vld [vmem:[%s56 + $0x8] sm:$0xff]
    %v59 = vld [vmem:[%s56 + $0x10] sm:$0xff]
    %v60 = vld [vmem:[%s56 + $0x18] sm:$0xff]
    %v61 = vld [vmem:[%s56 + $0x20] sm:$0xff]
    %v62 = vld [vmem:[%s56 + $0x28] sm:$0xff]
    %v63 = vld [vmem:[%s56 + $0x30] sm:$0xff]
    %v64 = vld [vmem:[%s56 + $0x38] sm:$0xff]
    %v66 = vsel %vm20, %v52, 0
    %v69 = vsel %vm20, %v53, 0
    %71 = vmatprep.subr.mxu0 0.0
    %72 = vmatpush1.msra.mxu0 0.0
    %73 = vmatprep.subr.mxu0 0.0
    %74 = vmatpush1.msra.mxu0 0.0
    %75 = vmatprep.subr.mxu0 0.0
    %76 = vmatpush1.msra.mxu0 0.0
    %77 = vmatprep.subr.mxu0 0.0
    %78 = vmatpush1.msra.mxu0 0.0
    %79 = vmatprep.subr.mxu0 0.0
    %80 = vmatpush1.msra.mxu0 0.0
    %81 = vmatprep.subr.mxu0 0.0
    %82 = vmatpush1.msra.mxu0 0.0
    %83 = vmatprep.subr.mxu0 0.0
    %84 = vmatpush1.msra.mxu0 0.0
    %85 = vmatprep.subr.mxu0 0.0
    %86 = vmatpush1.msra.mxu0 0.0
    %87 = vmatprep.subr.mxu0 0.0
    %88 = vmatpush1.msra.mxu0 %v64
    %89 = vmatprep.subr.mxu0 0.0
    %90 = vmatpush1.msra.mxu0 %v63
    %91 = vmatprep.subr.mxu0 0.0
    %92 = vmatpush1.msra.mxu0 %v62
    %93 = vmatprep.subr.mxu0 0.0
    %94 = vmatpush1.msra.mxu0 %v61
    %95 = vmatprep.subr.mxu0 0.0
    %96 = vmatpush1.msra.mxu0 %v60
    %97 = vmatprep.subr.mxu0 0.0
    %98 = vmatpush1.msra.mxu0 %v59
    %99 = vmatprep.subr.mxu0 0.0
    %100 = vmatpush1.msra.mxu0 %v58
    %101 = vmatprep.subr.mxu0 0.0
    %102 = vmatpush1.msra.mxu0 %v57
    %103 = vmatprep.subr.mxu0 0.0
    %104 = vmatpush2.msra.mxu0 0.0
    %105 = vmatprep.subr.mxu0 0.0
    %106 = vmatpush2.msra.mxu0 0.0
    %107 = vmatprep.subr.mxu0 0.0
    %108 = vmatpush2.msra.mxu0 0.0
    %109 = vmatprep.subr.mxu0 0.0
    %110 = vmatpush2.msra.mxu0 0.0
    %111 = vmatprep.subr.mxu0 0.0
    %112 = vmatpush2.msra.mxu0 0.0
    %113 = vmatprep.subr.mxu0 0.0
    %114 = vmatpush2.msra.mxu0 0.0
    %115 = vmatprep.subr.mxu0 0.0
    %116 = vmatpush2.msra.mxu0 0.0
    %117 = vmatprep.subr.mxu0 0.0
    %118 = vmatpush2.msra.mxu0 0.0
    %119 = vmatprep.subr.mxu0 0.0
    %120 = vmatpush2.msra.mxu0 0.0
    %121 = vmatprep.subr.mxu0 0.0
    %122 = vmatpush2.msra.mxu0 0.0
    %123 = vmatprep.subr.mxu0 0.0
    %124 = vmatpush2.msra.mxu0 0.0
    %125 = vmatprep.subr.mxu0 0.0
    %126 = vmatpush2.msra.mxu0 0.0
    %127 = vmatprep.subr.mxu0 0.0
    %128 = vmatpush2.msra.mxu0 0.0
    %129 = vmatprep.subr.mxu0 0.0
    %130 = vmatpush2.msra.mxu0 0.0
    %131 = vmatprep.subr.mxu0 0.0
    %132 = vmatpush2.msra.mxu0 0.0
    %133 = vmatprep.subr.mxu0 0.0
    %134 = vmatpush2.msra.mxu0 0.0
    %135 = vmatprep.mubr.f32.mxu0 0.0
    %136 = vmatmul.mubr.f32.gmra.mxu0 %v66
    %v137 = vpop.f32.mrf.mxu0
    %v138 = vadd.f32 0.0, %v137
    %v139 = vpop.f32.mrf.mxu0
    %140 = vmatprep.mubr.f32.mxu0 0.0
    %141 = vmatmul.mubr.f32.gmra.mxu0 %v69
    %v142 = vpop.f32.mrf.mxu0
    %v143 = vadd.f32 0.0, %v142
    %v144 = vpop.f32.mrf.mxu0
    %145 = vdwg.mxu0
    %v147 = vsel %vm20, %v39, 0
    %v150 = vsel %vm20, %v40, 0
    %152 = vmatprep.subr.mxu0 0.0
    %153 = vmatpush1.msra.mxu0 0.0
    %154 = vmatprep.subr.mxu0 0.0
    %155 = vmatpush1.msra.mxu0 0.0
    %156 = vmatprep.subr.mxu0 0.0
    %157 = vmatpush1.msra.mxu0 0.0
    %158 = vmatprep.subr.mxu0 0.0
    %159 = vmatpush1.msra.mxu0 0.0
    %160 = vmatprep.subr.mxu0 0.0
    %161 = vmatpush1.msra.mxu0 0.0
    %162 = vmatprep.subr.mxu0 0.0
    %163 = vmatpush1.msra.mxu0 0.0
    %164 = vmatprep.subr.mxu0 0.0
    %165 = vmatpush1.msra.mxu0 0.0
    %166 = vmatprep.subr.mxu0 0.0
    %167 = vmatpush1.msra.mxu0 0.0
    %168 = vmatprep.subr.mxu0 0.0
    %169 = vmatpush1.msra.mxu0 %v51
    %170 = vmatprep.subr.mxu0 0.0
    %171 = vmatpush1.msra.mxu0 %v50
    %172 = vmatprep.subr.mxu0 0.0
    %173 = vmatpush1.msra.mxu0 %v49
    %174 = vmatprep.subr.mxu0 0.0
    %175 = vmatpush1.msra.mxu0 %v48
    %176 = vmatprep.subr.mxu0 0.0
    %177 = vmatpush1.msra.mxu0 %v47
    %178 = vmatprep.subr.mxu0 0.0
    %179 = vmatpush1.msra.mxu0 %v46
    %180 = vmatprep.subr.mxu0 0.0
    %181 = vmatpush1.msra.mxu0 %v45
    %182 = vmatprep.subr.mxu0 0.0
    %183 = vmatpush1.msra.mxu0 %v44
    %184 = vmatprep.subr.mxu0 0.0
    %185 = vmatpush2.msra.mxu0 0.0
    %186 = vmatprep.subr.mxu0 0.0
    %187 = vmatpush2.msra.mxu0 0.0
    %188 = vmatprep.subr.mxu0 0.0
    %189 = vmatpush2.msra.mxu0 0.0
    %190 = vmatprep.subr.mxu0 0.0
    %191 = vmatpush2.msra.mxu0 0.0
    %192 = vmatprep.subr.mxu0 0.0
    %193 = vmatpush2.msra.mxu0 0.0
    %194 = vmatprep.subr.mxu0 0.0
    %195 = vmatpush2.msra.mxu0 0.0
    %196 = vmatprep.subr.mxu0 0.0
    %197 = vmatpush2.msra.mxu0 0.0
    %198 = vmatprep.subr.mxu0 0.0
    %199 = vmatpush2.msra.mxu0 0.0
    %200 = vmatprep.subr.mxu0 0.0
    %201 = vmatpush2.msra.mxu0 0.0
    %202 = vmatprep.subr.mxu0 0.0
    %203 = vmatpush2.msra.mxu0 0.0
    %204 = vmatprep.subr.mxu0 0.0
    %205 = vmatpush2.msra.mxu0 0.0
    %206 = vmatprep.subr.mxu0 0.0
    %207 = vmatpush2.msra.mxu0 0.0
    %208 = vmatprep.subr.mxu0 0.0
    %209 = vmatpush2.msra.mxu0 0.0
    %210 = vmatprep.subr.mxu0 0.0
    %211 = vmatpush2.msra.mxu0 0.0
    %212 = vmatprep.subr.mxu0 0.0
    %213 = vmatpush2.msra.mxu0 0.0
    %214 = vmatprep.subr.mxu0 0.0
    %215 = vmatpush2.msra.mxu0 0.0
    %216 = vmatprep.mubr.f32.mxu0 0.0
    %217 = vmatmul.mubr.f32.gmra.mxu0 %v147
    %v218 = vpop.f32.mrf.mxu0
    %v219 = vadd.f32 %v138, %v218
    %v220 = vpop.f32.mrf.mxu0
    %221 = vmatprep.mubr.f32.mxu0 0.0
    %222 = vmatmul.mubr.f32.gmra.mxu0 %v150
    %v223 = vpop.f32.mrf.mxu0
    %v224 = vadd.f32 %v143, %v223
    %v225 = vpop.f32.mrf.mxu0
    %226 = vdwg.mxu0
    %v227 = vld [vmem:[#allocation2 + $0x9] sm:$0xff]
    %v228 = vld [vmem:[#allocation2 + $0x11] sm:$0xff]
    %s229 = sadd.s32 %s41, 2
    %s230 = smul.u32 %s229, 64
    %s231 = scalar_lea.vmem %s1, %s230
    %v232 = vld [vmem:[%s231] sm:$0xff]
    %v233 = vld [vmem:[%s231 + $0x8] sm:$0xff]
    %v234 = vld [vmem:[%s231 + $0x10] sm:$0xff]
    %v235 = vld [vmem:[%s231 + $0x18] sm:$0xff]
    %v236 = vld [vmem:[%s231 + $0x20] sm:$0xff]
    %v237 = vld [vmem:[%s231 + $0x28] sm:$0xff]
    %v238 = vld [vmem:[%s231 + $0x30] sm:$0xff]
    %v239 = vld [vmem:[%s231 + $0x38] sm:$0xff]
    %v241 = vsel %vm20, %v227, 0
    %v244 = vsel %vm20, %v228, 0
    %246 = vmatprep.subr.mxu0 0.0
    %247 = vmatpush1.msra.mxu0 0.0
    %248 = vmatprep.subr.mxu0 0.0
    %249 = vmatpush1.msra.mxu0 0.0
    %250 = vmatprep.subr.mxu0 0.0
    %251 = vmatpush1.msra.mxu0 0.0
    %252 = vmatprep.subr.mxu0 0.0
    %253 = vmatpush1.msra.mxu0 0.0
    %254 = vmatprep.subr.mxu0 0.0
    %255 = vmatpush1.msra.mxu0 0.0
    %256 = vmatprep.subr.mxu0 0.0
    %257 = vmatpush1.msra.mxu0 0.0
    %258 = vmatprep.subr.mxu0 0.0
    %259 = vmatpush1.msra.mxu0 0.0
    %260 = vmatprep.subr.mxu0 0.0
    %261 = vmatpush1.msra.mxu0 0.0
    %262 = vmatprep.subr.mxu0 0.0
    %263 = vmatpush1.msra.mxu0 %v239
    %264 = vmatprep.subr.mxu0 0.0
    %265 = vmatpush1.msra.mxu0 %v238
    %266 = vmatprep.subr.mxu0 0.0
    %267 = vmatpush1.msra.mxu0 %v237
    %268 = vmatprep.subr.mxu0 0.0
    %269 = vmatpush1.msra.mxu0 %v236
    %270 = vmatprep.subr.mxu0 0.0
    %271 = vmatpush1.msra.mxu0 %v235
    %272 = vmatprep.subr.mxu0 0.0
    %273 = vmatpush1.msra.mxu0 %v234
    %274 = vmatprep.subr.mxu0 0.0
    %275 = vmatpush1.msra.mxu0 %v233
    %276 = vmatprep.subr.mxu0 0.0
    %277 = vmatpush1.msra.mxu0 %v232
    %278 = vmatprep.subr.mxu0 0.0
    %279 = vmatpush2.msra.mxu0 0.0
    %280 = vmatprep.subr.mxu0 0.0
    %281 = vmatpush2.msra.mxu0 0.0
    %282 = vmatprep.subr.mxu0 0.0
    %283 = vmatpush2.msra.mxu0 0.0
    %284 = vmatprep.subr.mxu0 0.0
    %285 = vmatpush2.msra.mxu0 0.0
    %286 = vmatprep.subr.mxu0 0.0
    %287 = vmatpush2.msra.mxu0 0.0
    %288 = vmatprep.subr.mxu0 0.0
    %289 = vmatpush2.msra.mxu0 0.0
    %290 = vmatprep.subr.mxu0 0.0
    %291 = vmatpush2.msra.mxu0 0.0
    %292 = vmatprep.subr.mxu0 0.0
    %293 = vmatpush2.msra.mxu0 0.0
    %294 = vmatprep.subr.mxu0 0.0
    %295 = vmatpush2.msra.mxu0 0.0
    %296 = vmatprep.subr.mxu0 0.0
    %297 = vmatpush2.msra.mxu0 0.0
    %298 = vmatprep.subr.mxu0 0.0
    %299 = vmatpush2.msra.mxu0 0.0
    %300 = vmatprep.subr.mxu0 0.0
    %301 = vmatpush2.msra.mxu0 0.0
    %302 = vmatprep.subr.mxu0 0.0
    %303 = vmatpush2.msra.mxu0 0.0
    %304 = vmatprep.subr.mxu0 0.0
    %305 = vmatpush2.msra.mxu0 0.0
    %306 = vmatprep.subr.mxu0 0.0
    %307 = vmatpush2.msra.mxu0 0.0
    %308 = vmatprep.subr.mxu0 0.0
    %309 = vmatpush2.msra.mxu0 0.0
    %310 = vmatprep.mubr.f32.mxu0 0.0
    %311 = vmatmul.mubr.f32.gmra.mxu0 %v241
    %v312 = vpop.f32.mrf.mxu0
    %v313 = vadd.f32 0.0, %v312
    %v314 = vpop.f32.mrf.mxu0
    %315 = vmatprep.mubr.f32.mxu0 0.0
    %316 = vmatmul.mubr.f32.gmra.mxu0 %v244
    %v317 = vpop.f32.mrf.mxu0
    %v318 = vadd.f32 0.0, %v317
    %v319 = vpop.f32.mrf.mxu0
    %320 = vdwg.mxu0
    %v321 = vadd.f32 %v219, %v313
    %v322 = vadd.f32 %v224, %v318
    %v323 = vsel %vm20, %v321, 0.0
    %v324 = vsel %vm20, %v322, 0.0
    %v325 = vadd.f32 %v323, %v324
    %v326 = vrot.slane %v325, 4
    %v327 = vadd.f32 %v325, %v326
    %v328 = vrot.slane %v327, 2
    %v329 = vadd.f32 %v327, %v328
    %v330 = vrot.slane %v329, 1
    %v331 = vadd.f32 %v329, %v330
    %v332 = vadd.f32 %v331, 0.0
    %v333 = vmul.f32 %v321, %v321
    %v334 = vmul.f32 %v322, %v322
    %v335 = vsel %vm20, %v333, 0.0
    %v336 = vsel %vm20, %v334, 0.0
    %v337 = vadd.f32 %v335, %v336
    %v338 = vrot.slane %v337, 4
    %v339 = vadd.f32 %v337, %v338
    %v340 = vrot.slane %v339, 2
    %v341 = vadd.f32 %v339, %v340
    %v342 = vrot.slane %v341, 1
    %v343 = vadd.f32 %v341, %v342
    %v344 = vadd.f32 %v343, 0.0
    %s345 = scalar_lea.vmem [#allocation2], 32
    %v346 = vld [vmem:[%s345 + $0x7] sm:$0xff]
    %v347 = vld [vmem:[%s345 + $0xf] sm:$0xff]
    %v348 = vld [vmem:[%s345 + $0x8] sm:$0xff]
    %v349 = vld [vmem:[%s345 + $0x10] sm:$0xff]
    %v351 = vsel %vm20, %v348, 0
    %v354 = vsel %vm20, %v349, 0
    %356 = vmatprep.subr.mxu0 0.0
    %357 = vmatpush1.msra.mxu0 0.0
    %358 = vmatprep.subr.mxu0 0.0
    %359 = vmatpush1.msra.mxu0 0.0
    %360 = vmatprep.subr.mxu0 0.0
    %361 = vmatpush1.msra.mxu0 0.0
    %362 = vmatprep.subr.mxu0 0.0
    %363 = vmatpush1.msra.mxu0 0.0
    %364 = vmatprep.subr.mxu0 0.0
    %365 = vmatpush1.msra.mxu0 0.0
    %366 = vmatprep.subr.mxu0 0.0
    %367 = vmatpush1.msra.mxu0 0.0
    %368 = vmatprep.subr.mxu0 0.0
    %369 = vmatpush1.msra.mxu0 0.0
    %370 = vmatprep.subr.mxu0 0.0
    %371 = vmatpush1.msra.mxu0 0.0
    %372 = vmatprep.subr.mxu0 0.0
    %373 = vmatpush1.msra.mxu0 %v64
    %374 = vmatprep.subr.mxu0 0.0
    %375 = vmatpush1.msra.mxu0 %v63
    %376 = vmatprep.subr.mxu0 0.0
    %377 = vmatpush1.msra.mxu0 %v62
    %378 = vmatprep.subr.mxu0 0.0
    %379 = vmatpush1.msra.mxu0 %v61
    %380 = vmatprep.subr.mxu0 0.0
    %381 = vmatpush1.msra.mxu0 %v60
    %382 = vmatprep.subr.mxu0 0.0
    %383 = vmatpush1.msra.mxu0 %v59
    %384 = vmatprep.subr.mxu0 0.0
    %385 = vmatpush1.msra.mxu0 %v58
    %386 = vmatprep.subr.mxu0 0.0
    %387 = vmatpush1.msra.mxu0 %v57
    %388 = vmatprep.subr.mxu0 0.0
    %389 = vmatpush2.msra.mxu0 0.0
    %390 = vmatprep.subr.mxu0 0.0
    %391 = vmatpush2.msra.mxu0 0.0
    %392 = vmatprep.subr.mxu0 0.0
    %393 = vmatpush2.msra.mxu0 0.0
    %394 = vmatprep.subr.mxu0 0.0
    %395 = vmatpush2.msra.mxu0 0.0
    %396 = vmatprep.subr.mxu0 0.0
    %397 = vmatpush2.msra.mxu0 0.0
    %398 = vmatprep.subr.mxu0 0.0
    %399 = vmatpush2.msra.mxu0 0.0
    %400 = vmatprep.subr.mxu0 0.0
    %401 = vmatpush2.msra.mxu0 0.0
    %402 = vmatprep.subr.mxu0 0.0
    %403 = vmatpush2.msra.mxu0 0.0
    %404 = vmatprep.subr.mxu0 0.0
    %405 = vmatpush2.msra.mxu0 0.0
    %406 = vmatprep.subr.mxu0 0.0
    %407 = vmatpush2.msra.mxu0 0.0
    %408 = vmatprep.subr.mxu0 0.0
    %409 = vmatpush2.msra.mxu0 0.0
    %410 = vmatprep.subr.mxu0 0.0
    %411 = vmatpush2.msra.mxu0 0.0
    %412 = vmatprep.subr.mxu0 0.0
    %413 = vmatpush2.msra.mxu0 0.0
    %414 = vmatprep.subr.mxu0 0.0
    %415 = vmatpush2.msra.mxu0 0.0
    %416 = vmatprep.subr.mxu0 0.0
    %417 = vmatpush2.msra.mxu0 0.0
    %418 = vmatprep.subr.mxu0 0.0
    %419 = vmatpush2.msra.mxu0 0.0
    %420 = vmatprep.mubr.f32.mxu0 0.0
    %421 = vmatmul.mubr.f32.gmra.mxu0 %v351
    %v422 = vpop.f32.mrf.mxu0
    %v423 = vadd.f32 0.0, %v422
    %v424 = vpop.f32.mrf.mxu0
    %425 = vmatprep.mubr.f32.mxu0 0.0
    %426 = vmatmul.mubr.f32.gmra.mxu0 %v354
    %v427 = vpop.f32.mrf.mxu0
    %v428 = vadd.f32 0.0, %v427
    %v429 = vpop.f32.mrf.mxu0
    %430 = vdwg.mxu0
    %v432 = vsel %vm20, %v346, 0
    %v435 = vsel %vm20, %v347, 0
    %437 = vmatprep.subr.mxu0 0.0
    %438 = vmatpush1.msra.mxu0 0.0
    %439 = vmatprep.subr.mxu0 0.0
    %440 = vmatpush1.msra.mxu0 0.0
    %441 = vmatprep.subr.mxu0 0.0
    %442 = vmatpush1.msra.mxu0 0.0
    %443 = vmatprep.subr.mxu0 0.0
    %444 = vmatpush1.msra.mxu0 0.0
    %445 = vmatprep.subr.mxu0 0.0
    %446 = vmatpush1.msra.mxu0 0.0
    %447 = vmatprep.subr.mxu0 0.0
    %448 = vmatpush1.msra.mxu0 0.0
    %449 = vmatprep.subr.mxu0 0.0
    %450 = vmatpush1.msra.mxu0 0.0
    %451 = vmatprep.subr.mxu0 0.0
    %452 = vmatpush1.msra.mxu0 0.0
    %453 = vmatprep.subr.mxu0 0.0
    %454 = vmatpush1.msra.mxu0 %v51
    %455 = vmatprep.subr.mxu0 0.0
    %456 = vmatpush1.msra.mxu0 %v50
    %457 = vmatprep.subr.mxu0 0.0
    %458 = vmatpush1.msra.mxu0 %v49
    %459 = vmatprep.subr.mxu0 0.0
    %460 = vmatpush1.msra.mxu0 %v48
    %461 = vmatprep.subr.mxu0 0.0
    %462 = vmatpush1.msra.mxu0 %v47
    %463 = vmatprep.subr.mxu0 0.0
    %464 = vmatpush1.msra.mxu0 %v46
    %465 = vmatprep.subr.mxu0 0.0
    %466 = vmatpush1.msra.mxu0 %v45
    %467 = vmatprep.subr.mxu0 0.0
    %468 = vmatpush1.msra.mxu0 %v44
    %469 = vmatprep.subr.mxu0 0.0
    %470 = vmatpush2.msra.mxu0 0.0
    %471 = vmatprep.subr.mxu0 0.0
    %472 = vmatpush2.msra.mxu0 0.0
    %473 = vmatprep.subr.mxu0 0.0
    %474 = vmatpush2.msra.mxu0 0.0
    %475 = vmatprep.subr.mxu0 0.0
    %476 = vmatpush2.msra.mxu0 0.0
    %477 = vmatprep.subr.mxu0 0.0
    %478 = vmatpush2.msra.mxu0 0.0
    %479 = vmatprep.subr.mxu0 0.0
    %480 = vmatpush2.msra.mxu0 0.0
    %481 = vmatprep.subr.mxu0 0.0
    %482 = vmatpush2.msra.mxu0 0.0
    %483 = vmatprep.subr.mxu0 0.0
    %484 = vmatpush2.msra.mxu0 0.0
    %485 = vmatprep.subr.mxu0 0.0
    %486 = vmatpush2.msra.mxu0 0.0
    %487 = vmatprep.subr.mxu0 0.0
    %488 = vmatpush2.msra.mxu0 0.0
    %489 = vmatprep.subr.mxu0 0.0
    %490 = vmatpush2.msra.mxu0 0.0
    %491 = vmatprep.subr.mxu0 0.0
    %492 = vmatpush2.msra.mxu0 0.0
    %493 = vmatprep.subr.mxu0 0.0
    %494 = vmatpush2.msra.mxu0 0.0
    %495 = vmatprep.subr.mxu0 0.0
    %496 = vmatpush2.msra.mxu0 0.0
    %497 = vmatprep.subr.mxu0 0.0
    %498 = vmatpush2.msra.mxu0 0.0
    %499 = vmatprep.subr.mxu0 0.0
    %500 = vmatpush2.msra.mxu0 0.0
    %501 = vmatprep.mubr.f32.mxu0 0.0
    %502 = vmatmul.mubr.f32.gmra.mxu0 %v432
    %v503 = vpop.f32.mrf.mxu0
    %v504 = vadd.f32 %v423, %v503
    %v505 = vpop.f32.mrf.mxu0
    %506 = vmatprep.mubr.f32.mxu0 0.0
    %507 = vmatmul.mubr.f32.gmra.mxu0 %v435
    %v508 = vpop.f32.mrf.mxu0
    %v509 = vadd.f32 %v428, %v508
    %v510 = vpop.f32.mrf.mxu0
    %511 = vdwg.mxu0
    %v512 = vld [vmem:[%s345 + $0x9] sm:$0xff]
    %v513 = vld [vmem:[%s345 + $0x11] sm:$0xff]
    %v515 = vsel %vm20, %v512, 0
    %v518 = vsel %vm20, %v513, 0
    %520 = vmatprep.subr.mxu0 0.0
    %521 = vmatpush1.msra.mxu0 0.0
    %522 = vmatprep.subr.mxu0 0.0
    %523 = vmatpush1.msra.mxu0 0.0
    %524 = vmatprep.subr.mxu0 0.0
    %525 = vmatpush1.msra.mxu0 0.0
    %526 = vmatprep.subr.mxu0 0.0
    %527 = vmatpush1.msra.mxu0 0.0
    %528 = vmatprep.subr.mxu0 0.0
    %529 = vmatpush1.msra.mxu0 0.0
    %530 = vmatprep.subr.mxu0 0.0
    %531 = vmatpush1.msra.mxu0 0.0
    %532 = vmatprep.subr.mxu0 0.0
    %533 = vmatpush1.msra.mxu0 0.0
    %534 = vmatprep.subr.mxu0 0.0
    %535 = vmatpush1.msra.mxu0 0.0
    %536 = vmatprep.subr.mxu0 0.0
    %537 = vmatpush1.msra.mxu0 %v239
    %538 = vmatprep.subr.mxu0 0.0
    %539 = vmatpush1.msra.mxu0 %v238
    %540 = vmatprep.subr.mxu0 0.0
    %541 = vmatpush1.msra.mxu0 %v237
    %542 = vmatprep.subr.mxu0 0.0
    %543 = vmatpush1.msra.mxu0 %v236
    %544 = vmatprep.subr.mxu0 0.0
    %545 = vmatpush1.msra.mxu0 %v235
    %546 = vmatprep.subr.mxu0 0.0
    %547 = vmatpush1.msra.mxu0 %v234
    %548 = vmatprep.subr.mxu0 0.0
    %549 = vmatpush1.msra.mxu0 %v233
    %550 = vmatprep.subr.mxu0 0.0
    %551 = vmatpush1.msra.mxu0 %v232
    %552 = vmatprep.subr.mxu0 0.0
    %553 = vmatpush2.msra.mxu0 0.0
    %554 = vmatprep.subr.mxu0 0.0
    %555 = vmatpush2.msra.mxu0 0.0
    %556 = vmatprep.subr.mxu0 0.0
    %557 = vmatpush2.msra.mxu0 0.0
    %558 = vmatprep.subr.mxu0 0.0
    %559 = vmatpush2.msra.mxu0 0.0
    %560 = vmatprep.subr.mxu0 0.0
    %561 = vmatpush2.msra.mxu0 0.0
    %562 = vmatprep.subr.mxu0 0.0
    %563 = vmatpush2.msra.mxu0 0.0
    %564 = vmatprep.subr.mxu0 0.0
    %565 = vmatpush2.msra.mxu0 0.0
    %566 = vmatprep.subr.mxu0 0.0
    %567 = vmatpush2.msra.mxu0 0.0
    %568 = vmatprep.subr.mxu0 0.0
    %569 = vmatpush2.msra.mxu0 0.0
    %570 = vmatprep.subr.mxu0 0.0
    %571 = vmatpush2.msra.mxu0 0.0
    %572 = vmatprep.subr.mxu0 0.0
    %573 = vmatpush2.msra.mxu0 0.0
    %574 = vmatprep.subr.mxu0 0.0
    %575 = vmatpush2.msra.mxu0 0.0
    %576 = vmatprep.subr.mxu0 0.0
    %577 = vmatpush2.msra.mxu0 0.0
    %578 = vmatprep.subr.mxu0 0.0
    %579 = vmatpush2.msra.mxu0 0.0
    %580 = vmatprep.subr.mxu0 0.0
    %581 = vmatpush2.msra.mxu0 0.0
    %582 = vmatprep.subr.mxu0 0.0
    %583 = vmatpush2.msra.mxu0 0.0
    %584 = vmatprep.mubr.f32.mxu0 0.0
    %585 = vmatmul.mubr.f32.gmra.mxu0 %v515
    %v586 = vpop.f32.mrf.mxu0
    %v587 = vadd.f32 0.0, %v586
    %v588 = vpop.f32.mrf.mxu0
    %589 = vmatprep.mubr.f32.mxu0 0.0
    %590 = vmatmul.mubr.f32.gmra.mxu0 %v518
    %v591 = vpop.f32.mrf.mxu0
    %v592 = vadd.f32 0.0, %v591
    %v593 = vpop.f32.mrf.mxu0
    %594 = vdwg.mxu0
    %v595 = vadd.f32 %v504, %v587
    %v596 = vadd.f32 %v509, %v592
    %v597 = vsel %vm20, %v595, 0.0
    %v598 = vsel %vm20, %v596, 0.0
    %v599 = vadd.f32 %v597, %v598
    %v600 = vrot.slane %v599, 4
    %v601 = vadd.f32 %v599, %v600
    %v602 = vrot.slane %v601, 2
    %v603 = vadd.f32 %v601, %v602
    %v604 = vrot.slane %v603, 1
    %v605 = vadd.f32 %v603, %v604
    %v606 = vadd.f32 %v332, %v605
    %v607 = vmul.f32 %v595, %v595
    %v608 = vmul.f32 %v596, %v596
    %v609 = vsel %vm20, %v607, 0.0
    %v610 = vsel %vm20, %v608, 0.0
    %v611 = vadd.f32 %v609, %v610
    %v612 = vrot.slane %v611, 4
    %v613 = vadd.f32 %v611, %v612
    %v614 = vrot.slane %v613, 2
    %v615 = vadd.f32 %v613, %v614
    %v616 = vrot.slane %v615, 1
    %v617 = vadd.f32 %v615, %v616
    %v618 = vadd.f32 %v344, %v617
    %v619 = vld [vmem:[%s2] sm:$0xff]
    %v620 = vld [vmem:[%s2 + $0x8] sm:$0xff]
    %v621 = vld [vmem:[%s2 + $0x10] sm:$0xff]
    %v622 = vld [vmem:[%s2 + $0x18] sm:$0xff]
    %v623 = vld [vmem:[%s2 + $0x20] sm:$0xff]
    %v624 = vld [vmem:[%s2 + $0x28] sm:$0xff]
    %v625 = vld [vmem:[%s2 + $0x30] sm:$0xff]
    %v626 = vld [vmem:[%s2 + $0x38] sm:$0xff]
    %v628 = vsel %vm20, %v606, 0
    %630 = vmatprep.subr.mxu0 0.0
    %631 = vmatpush1.msra.mxu0 0.0
    %632 = vmatprep.subr.mxu0 0.0
    %633 = vmatpush1.msra.mxu0 0.0
    %634 = vmatprep.subr.mxu0 0.0
    %635 = vmatpush1.msra.mxu0 0.0
    %636 = vmatprep.subr.mxu0 0.0
    %637 = vmatpush1.msra.mxu0 0.0
    %638 = vmatprep.subr.mxu0 0.0
    %639 = vmatpush1.msra.mxu0 0.0
    %640 = vmatprep.subr.mxu0 0.0
    %641 = vmatpush1.msra.mxu0 0.0
    %642 = vmatprep.subr.mxu0 0.0
    %643 = vmatpush1.msra.mxu0 0.0
    %644 = vmatprep.subr.mxu0 0.0
    %645 = vmatpush1.msra.mxu0 0.0
    %646 = vmatprep.subr.mxu0 0.0
    %647 = vmatpush1.msra.mxu0 %v626
    %648 = vmatprep.subr.mxu0 0.0
    %649 = vmatpush1.msra.mxu0 %v625
    %650 = vmatprep.subr.mxu0 0.0
    %651 = vmatpush1.msra.mxu0 %v624
    %652 = vmatprep.subr.mxu0 0.0
    %653 = vmatpush1.msra.mxu0 %v623
    %654 = vmatprep.subr.mxu0 0.0
    %655 = vmatpush1.msra.mxu0 %v622
    %656 = vmatprep.subr.mxu0 0.0
    %657 = vmatpush1.msra.mxu0 %v621
    %658 = vmatprep.subr.mxu0 0.0
    %659 = vmatpush1.msra.mxu0 %v620
    %660 = vmatprep.subr.mxu0 0.0
    %661 = vmatpush1.msra.mxu0 %v619
    %662 = vmatprep.subr.mxu0 0.0
    %663 = vmatpush2.msra.mxu0 0.0
    %664 = vmatprep.subr.mxu0 0.0
    %665 = vmatpush2.msra.mxu0 0.0
    %666 = vmatprep.subr.mxu0 0.0
    %667 = vmatpush2.msra.mxu0 0.0
    %668 = vmatprep.subr.mxu0 0.0
    %669 = vmatpush2.msra.mxu0 0.0
    %670 = vmatprep.subr.mxu0 0.0
    %671 = vmatpush2.msra.mxu0 0.0
    %672 = vmatprep.subr.mxu0 0.0
    %673 = vmatpush2.msra.mxu0 0.0
    %674 = vmatprep.subr.mxu0 0.0
    %675 = vmatpush2.msra.mxu0 0.0
    %676 = vmatprep.subr.mxu0 0.0
    %677 = vmatpush2.msra.mxu0 0.0
    %678 = vmatprep.subr.mxu0 0.0
    %679 = vmatpush2.msra.mxu0 0.0
    %680 = vmatprep.subr.mxu0 0.0
    %681 = vmatpush2.msra.mxu0 0.0
    %682 = vmatprep.subr.mxu0 0.0
    %683 = vmatpush2.msra.mxu0 0.0
    %684 = vmatprep.subr.mxu0 0.0
    %685 = vmatpush2.msra.mxu0 0.0
    %686 = vmatprep.subr.mxu0 0.0
    %687 = vmatpush2.msra.mxu0 0.0
    %688 = vmatprep.subr.mxu0 0.0
    %689 = vmatpush2.msra.mxu0 0.0
    %690 = vmatprep.subr.mxu0 0.0
    %691 = vmatpush2.msra.mxu0 0.0
    %692 = vmatprep.subr.mxu0 0.0
    %693 = vmatpush2.msra.mxu0 0.0
    %694 = vmatprep.mubr.f32.mxu0 0.0
    %695 = vmatmul.mubr.f32.gmra.mxu0 %v628
    %v696 = vpop.f32.mrf.mxu0
    %v697 = vadd.f32 0.0, %v696
    %v698 = vpop.f32.mrf.mxu0
    %699 = vdwg.mxu0
    %v701 = vsel %vm20, %v618, 0
    %703 = vmatprep.subr.mxu0 0.0
    %704 = vmatpush1.msra.mxu0 0.0
    %705 = vmatprep.subr.mxu0 0.0
    %706 = vmatpush1.msra.mxu0 0.0
    %707 = vmatprep.subr.mxu0 0.0
    %708 = vmatpush1.msra.mxu0 0.0
    %709 = vmatprep.subr.mxu0 0.0
    %710 = vmatpush1.msra.mxu0 0.0
    %711 = vmatprep.subr.mxu0 0.0
    %712 = vmatpush1.msra.mxu0 0.0
    %713 = vmatprep.subr.mxu0 0.0
    %714 = vmatpush1.msra.mxu0 0.0
    %715 = vmatprep.subr.mxu0 0.0
    %716 = vmatpush1.msra.mxu0 0.0
    %717 = vmatprep.subr.mxu0 0.0
    %718 = vmatpush1.msra.mxu0 0.0
    %719 = vmatprep.subr.mxu0 0.0
    %720 = vmatpush1.msra.mxu0 %v626
    %721 = vmatprep.subr.mxu0 0.0
    %722 = vmatpush1.msra.mxu0 %v625
    %723 = vmatprep.subr.mxu0 0.0
    %724 = vmatpush1.msra.mxu0 %v624
    %725 = vmatprep.subr.mxu0 0.0
    %726 = vmatpush1.msra.mxu0 %v623
    %727 = vmatprep.subr.mxu0 0.0
    %728 = vmatpush1.msra.mxu0 %v622
    %729 = vmatprep.subr.mxu0 0.0
    %730 = vmatpush1.msra.mxu0 %v621
    %731 = vmatprep.subr.mxu0 0.0
    %732 = vmatpush1.msra.mxu0 %v620
    %733 = vmatprep.subr.mxu0 0.0
    %734 = vmatpush1.msra.mxu0 %v619
    %735 = vmatprep.subr.mxu0 0.0
    %736 = vmatpush2.msra.mxu0 0.0
    %737 = vmatprep.subr.mxu0 0.0
    %738 = vmatpush2.msra.mxu0 0.0
    %739 = vmatprep.subr.mxu0 0.0
    %740 = vmatpush2.msra.mxu0 0.0
    %741 = vmatprep.subr.mxu0 0.0
    %742 = vmatpush2.msra.mxu0 0.0
    %743 = vmatprep.subr.mxu0 0.0
    %744 = vmatpush2.msra.mxu0 0.0
    %745 = vmatprep.subr.mxu0 0.0
    %746 = vmatpush2.msra.mxu0 0.0
    %747 = vmatprep.subr.mxu0 0.0
    %748 = vmatpush2.msra.mxu0 0.0
    %749 = vmatprep.subr.mxu0 0.0
    %750 = vmatpush2.msra.mxu0 0.0
    %751 = vmatprep.subr.mxu0 0.0
    %752 = vmatpush2.msra.mxu0 0.0
    %753 = vmatprep.subr.mxu0 0.0
    %754 = vmatpush2.msra.mxu0 0.0
    %755 = vmatprep.subr.mxu0 0.0
    %756 = vmatpush2.msra.mxu0 0.0
    %757 = vmatprep.subr.mxu0 0.0
    %758 = vmatpush2.msra.mxu0 0.0
    %759 = vmatprep.subr.mxu0 0.0
    %760 = vmatpush2.msra.mxu0 0.0
    %761 = vmatprep.subr.mxu0 0.0
    %762 = vmatpush2.msra.mxu0 0.0
    %763 = vmatprep.subr.mxu0 0.0
    %764 = vmatpush2.msra.mxu0 0.0
    %765 = vmatprep.subr.mxu0 0.0
    %766 = vmatpush2.msra.mxu0 0.0
    %767 = vmatprep.mubr.f32.mxu0 0.0
    %768 = vmatmul.mubr.f32.gmra.mxu0 %v701
    %v769 = vpop.f32.mrf.mxu0
    %v770 = vadd.f32 0.0, %v769
    %v771 = vpop.f32.mrf.mxu0
    %772 = vdwg.mxu0
    %v773 = vmul.f32 %v697, 0.001953125
    %v774 = vmul.f32 %v770, 0.001953125
    %v775 = vmul.f32 %v773, %v773
    %v776 = vsub.f32 %v774, %v775
    %v777 = vmax.f32 %v776, 0.0
    %v778 = vadd.f32 %v777, 1e-05
    %v779 = vrsqrt.pop %v778
    %s780 = scalar_lea.vmem %s3, %s34
    %v781 = vld [vmem:[%s780] sm:$0x1]
    %v782 = vmul.f32 %v779, %v781
    %s783 = scalar_lea.vmem %s4, %s34
    %v784 = vld [vmem:[%s783] sm:$0x1]
    %v785 = vmul.f32 %v773, %v782
    %v786 = vsub.f32 %v784, %v785
    %v787 = vlaneseq
    %v788 = vshrl.u32 %v787, 7
    %v789 = vsub.s32 0, %v788
    %v790 = vrot.slane %v782, %v789
    %v791 = vmul.f32 %v321, %v790
    %v792 = vmul.f32 %v322, %v790
    %v794 = vlaneseq
    %v795 = vshrl.u32 %v794, 7
    %v796 = vsub.s32 0, %v795
    %v797 = vrot.slane %v786, %v796
    %v799 = vadd.f32 %v791, %v797
    %v800 = vadd.f32 %v792, %v797
    %vm801 = vcmp.ge.f32.partialorder %v799, 0.0
    %vm802 = vcmp.ge.f32.partialorder %v800, 0.0
    %v803 = vmul.f32 %v799, 0.01
    %v804 = vmul.f32 %v800, 0.01
    %v805 = vsel %vm801, %v799, %v803
    %v806 = vsel %vm802, %v800, %v804
    %807 = vst.msk [vmem:[#allocation2 + $0x8] sm:$0xff] %vm20, %v805
    %808 = vst.msk [vmem:[#allocation2 + $0x10] sm:$0xff] %vm20, %v806
    %v809 = vmul.f32 %v595, %v790
    %v810 = vmul.f32 %v596, %v790
    %v811 = vadd.f32 %v809, %v797
    %v812 = vadd.f32 %v810, %v797
    %vm813 = vcmp.ge.f32.partialorder %v811, 0.0
    %vm814 = vcmp.ge.f32.partialorder %v812, 0.0
    %v815 = vmul.f32 %v811, 0.01
    %v816 = vmul.f32 %v812, 0.01
    %v817 = vsel %vm813, %v811, %v815
    %v818 = vsel %vm814, %v812, %v816
    %819 = vst.msk [vmem:[%s345 + $0x8] sm:$0xff] %vm20, %v817
    %820 = vst.msk [vmem:[%s345 + $0x10] sm:$0xff] %vm20, %v818
  $region26: #{feature_generator_forward.1} parent=0 // loop_footer
    %s38 = sadd.s32 1, %s34
  $region27: #{feature_generator_forward.1} parent=0 // loop_footer_branch
    %33 = sbr.rel target = $region23
  $region28: #{feature_generator_forward.1} parent=0 // loop_exit
    _
  %v821 = vld [vmem:[#allocation2 + $0x8] sm:$0xff]
  %v822 = vld [vmem:[#allocation2 + $0x10] sm:$0xff]
  %v823 = vld [vmem:[#allocation2 + $0x28] sm:$0xff]
  %v824 = vld [vmem:[#allocation2 + $0x30] sm:$0xff]
  %825 = vst.msk [vmem:[%s5] sm:$0xff] %vm20, %v821
  %826 = vst.msk [vmem:[%s5 + $0x8] sm:$0xff] %vm20, %v822
  %827 = vst.msk [vmem:[%s5 + $0x10] sm:$0xff] %vm20, %v823
  %828 = vst.msk [vmem:[%s5 + $0x18] sm:$0xff] %vm20, %v824
  // Predicated region
  $region29: #{feature_generator_forward.1} parent=0 // pred_check
    _
  $region30: #{feature_generator_forward.1} parent=0 // pred_check_branch
    %830 = sbr.rel (0) target = $region32
  $region31: #{feature_generator_forward.1} parent=0 // pred_region
    _
  $region32: #{feature_generator_forward.1} parent=0 // pred_fallthru
    _
  // Predicated region
  $region33: #{feature_generator_forward.1} parent=0 // pred_check
    _
  $region34: #{feature_generator_forward.1} parent=0 // pred_check_branch
    %832 = sbr.rel (0) target = $region36
  $region35: #{feature_generator_forward.1} parent=0 // pred_region
    _
  $region36: #{feature_generator_forward.1} parent=0 // pred_fallthru
    _

</llo_original>
